<compile_context>
chip_gen: v6e
topology: v6e:2x2x1
jax: 0.10.0
libtpu: 0.0.40
codegen_flags: <defaults>
</compile_context>

<pallas_src>
import functools

import jax
import jax.numpy as jnp
from jax import lax
from jax.experimental import pallas as pl
from jax.experimental.pallas import tpu as pltpu

LANES = 128
MAX_BLOCK_ROWS = 4096                 # (4096,128) f32 = 2 MiB; 2 inputs x 2 bufs = 8 MiB VMEM
VMEM_LIMIT_BYTES = 24 * 1024 * 1024   # explicit cap: > v5e 16 MiB default, v7x-safe (<28 MiB)


def _round_up(x, m):
    return ((x + m - 1) // m) * m


def _sublane_for(dtype):
    # second-to-last block dim must be a multiple of 8 (f32) / 16 (bf16,f16).
    return {4: 8, 2: 16, 1: 32}[jnp.dtype(dtype).itemsize]


def _n_parallel():
    # Leading "parallel" grid axis only pays off where one JAX device exposes
    # 2 TensorCores (v7x). On v5e/v6e it is just an extra sequential loop.
    try:
        kind = jax.devices()[0].device_kind.lower()
    except Exception:
        return 1
    return 2 if "v7" in kind else 1


def _pow(base, gamma):
    # Integer gamma stays on the VPU (integer_pow -> multiplies), never general pow.
    if isinstance(gamma, int) or (isinstance(gamma, float) and float(gamma).is_integer()):
        g = int(gamma)
        if g == 0:
            return jnp.ones_like(base)
        return lax.integer_pow(base, g)
    return jnp.power(base, jnp.float32(gamma))


def _focal_elementwise(x, t, alpha, gamma):
    # Numerically stable BCE-with-logits (matches F.binary_cross_entropy_with_logits):
    #   bce = max(x,0) - x*t + log1p(exp(-|x|)) ; pt = exp(-bce)
    x = x.astype(jnp.float32)
    t = t.astype(jnp.float32)
    bce = jnp.maximum(x, 0.0) - x * t + jnp.log1p(jnp.exp(-jnp.abs(x)))
    pt = jnp.exp(-bce)
    focal = _pow(1.0 - pt, gamma) * bce
    if float(alpha) != 1.0:
        focal = focal * jnp.float32(alpha)
    return focal


def _focal_loss_kernel(x_ref, t_ref, out_ref, acc_ref, *,
                       alpha, gamma, valid_rows, block_rows, steps_per_core):
    p = pl.program_id(0)          # parallel (core) axis
    i = pl.program_id(1)          # sequential reduction axis
    n_i = pl.num_programs(1)

    @pl.when(i == 0)
    def _init():
        acc_ref[...] = jnp.zeros_like(acc_ref)

    block_row_start = (p * steps_per_core + i) * block_rows

    # Fully out-of-range (clamped) steps skip all compute: DMA cost only.
    @pl.when(block_row_start < valid_rows)
    def _compute():
        focal = _focal_elementwise(x_ref[...], t_ref[...], alpha, gamma)

        # Interior (fully valid) blocks: fold into the vreg-sized accumulator
        # with pure VALU adds; no iota/select.
        @pl.when(block_row_start + block_rows <= valid_rows)
        def _full():
            acc_ref[...] += focal.reshape(-1, 8, LANES).sum(axis=0)

        # Boundary block only: row-granularity mask (overhang rows of a partial
        # BlockSpec block hold unspecified data; jnp.where is a true select).
        @pl.when(block_row_start + block_rows > valid_rows)
        def _tail():
            row = lax.broadcasted_iota(jnp.int32, (block_rows, LANES), 0)
            masked = jnp.where(block_row_start + row < valid_rows, focal, 0.0)
            acc_ref[...] += masked.reshape(-1, 8, LANES).sum(axis=0)

    # Single cross-lane reduce (one vreg) per core, only at the final step.
    @pl.when(i == n_i - 1)
    def _finalize():
        out_ref[0, 0] = jnp.sum(acc_ref[...])


def _as_float(a):
    # Stream native f32/bf16/f16; anything else is cast to f32 up front.
    if (not jnp.issubdtype(a.dtype, jnp.floating)
            or jnp.dtype(a.dtype).itemsize not in (2, 4)):
        a = a.astype(jnp.float32)
    return a


def focal_loss(outputs, targets, alpha=1.0, gamma=2, reduction="mean"):
    assert outputs.shape == targets.shape
    if reduction not in ("mean", "sum"):
        # TODO(synk): reduction='none' needs an elementwise-output kernel;
        # only 'mean'/'sum' take the Pallas hot path.
        raise NotImplementedError("reduction='none' not implemented")

    total = int(outputs.size)
    if total == 0:
        return jnp.float32(0.0)

    x_flat = jnp.ravel(_as_float(outputs))
    t_flat = jnp.ravel(_as_float(targets))

    rows = total // LANES          # lane-aligned prefix rows
    rem = total - rows * LANES     # <128-element remainder

    loss_sum = jnp.float32(0.0)

    if rows > 0:
        main = rows * LANES
        # Lane-aligned sizes reshape zero-copy; ragged sizes only slice the
        # aligned prefix (no full-array jnp.pad + rewrite).
        x2 = (x_flat if rem == 0 else x_flat[:main]).reshape(rows, LANES)
        t2 = (t_flat if rem == 0 else t_flat[:main]).reshape(rows, LANES)

        sub = max(_sublane_for(x2.dtype), _sublane_for(t2.dtype))
        block_rows = min(MAX_BLOCK_ROWS, _round_up(rows, sub))
        nblocks = pl.cdiv(rows, block_rows)
        n_parallel = _n_parallel()
        steps_per_core = pl.cdiv(nblocks, n_parallel)
        grid = (n_parallel, steps_per_core)

        def in_map(p, i):
            # Clamp overhanging steps onto the last real block; their compute is
            # skipped in-kernel (block_row_start >= valid_rows).
            blk = p * steps_per_core + i
            return (jnp.minimum(blk, nblocks - 1), 0)

        kernel = functools.partial(
            _focal_loss_kernel,
            alpha=float(alpha),
            gamma=gamma,
            valid_rows=rows,
            block_rows=block_rows,
            steps_per_core=steps_per_core,
        )

        bytes_in = main * (jnp.dtype(x2.dtype).itemsize + jnp.dtype(t2.dtype).itemsize)
        cost = pl.CostEstimate(
            flops=12 * main,
            transcendentals=3 * main,
            bytes_accessed=bytes_in + n_parallel * 4,
        )

        partial_sums = pl.pallas_call(
            kernel,
            out_shape=jax.ShapeDtypeStruct((n_parallel, 1), jnp.float32),
            grid_spec=pltpu.PrefetchScalarGridSpec(
                num_scalar_prefetch=0,
                grid=grid,
                in_specs=[
                    pl.BlockSpec((block_rows, LANES), in_map),
                    pl.BlockSpec((block_rows, LANES), in_map),
                ],
                out_specs=pl.BlockSpec(
                    (1, 1), lambda p, i: (p, 0), memory_space=pltpu.SMEM
                ),
                scratch_shapes=[pltpu.VMEM((8, LANES), jnp.float32)],
            ),
            compiler_params=pltpu.CompilerParams(
                dimension_semantics=("parallel", "arbitrary"),
                vmem_limit_bytes=VMEM_LIMIT_BYTES,
            ),
            cost_estimate=cost,
        )(x2, t2)

        loss_sum = loss_sum + jnp.sum(partial_sums)

    if rem > 0:
        # Tiny (<128 elem) XLA epilogue for the lane remainder.
        tail = _focal_elementwise(x_flat[rows * LANES:], t_flat[rows * LANES:],
                                  alpha, gamma)
        loss_sum = loss_sum + jnp.sum(tail)

    if reduction == "mean":
        return loss_sum / jnp.float32(total)
    return loss_sum


def _focal_loss_ref(outputs, targets, alpha=1.0, gamma=2, reduction="mean"):
    x = outputs.astype(jnp.float32)
    t = targets.astype(jnp.float32)
    bce = jnp.maximum(x, 0.0) - x * t + jnp.log1p(jnp.exp(-jnp.abs(x)))
    pt = jnp.exp(-bce)
    focal = alpha * (1.0 - pt) ** gamma * bce
    return jnp.mean(focal) if reduction == "mean" else jnp.sum(focal)


if __name__ == "__main__":
    key = jax.random.PRNGKey(0)
    k1, k2, k3, k4 = jax.random.split(key, 4)

    # Primary case: small NCHW-like logits and binary targets (lane-aligned, zero-copy).
    outputs = jax.random.normal(k1, (2, 4, 16, 16), dtype=jnp.float32)
    targets = (jax.random.uniform(k2, (2, 4, 16, 16)) > 0.5).astype(jnp.float32)
    loss = focal_loss(outputs, targets, alpha=1.0, gamma=2, reduction="mean")
    jax.block_until_ready(loss)
    ref = _focal_loss_ref(outputs, targets, alpha=1.0, gamma=2)
    assert jnp.allclose(loss, ref, rtol=1e-5, atol=1e-6), (loss, ref)

    # Ragged case: exercises kernel prefix + row-mask boundary block + XLA epilogue.
    o2 = jax.random.normal(k3, (5, 1000), dtype=jnp.float32)
    t2 = (jax.random.uniform(k4, (5, 1000)) > 0.5).astype(jnp.float32)
    l2 = focal_loss(o2, t2, alpha=0.25, gamma=2, reduction="mean")
    jax.block_until_ready(l2)
    r2 = _focal_loss_ref(o2, t2, alpha=0.25, gamma=2)
    assert jnp.allclose(l2, r2, rtol=1e-5, atol=1e-6), (l2, r2)

    # Tiny case (< 128 elements): pure XLA epilogue path, non-default gamma.
    o3 = jax.random.normal(k1, (3, 5, 7), dtype=jnp.float32)
    t3 = (jax.random.uniform(k2, (3, 5, 7)) > 0.5).astype(jnp.float32)
    l3 = focal_loss(o3, t3, alpha=1.0, gamma=3, reduction="mean")
    jax.block_until_ready(l3)
    r3 = _focal_loss_ref(o3, t3, alpha=1.0, gamma=3)
    assert jnp.allclose(l3, r3, rtol=1e-5, atol=1e-6), (l3, r3)

    # Multi-block case: 6144 rows -> full block + partial block, accumulation over
    # the sequential axis (and the v7x parallel clamp where applicable); sum reduction.
    o4 = jax.random.normal(k3, (8, 8, 96, 128), dtype=jnp.float32)
    t4 = (jax.random.uniform(k4, (8, 8, 96, 128)) > 0.5).astype(jnp.float32)
    l4 = focal_loss(o4, t4, alpha=1.0, gamma=2, reduction="sum")
    jax.block_until_ready(l4)
    r4 = _focal_loss_ref(o4, t4, alpha=1.0, gamma=2, reduction="sum")
    assert jnp.allclose(l4, r4, rtol=1e-4, atol=1e-3), (l4, r4)

    print("KERNEL_OK")
</pallas_src>

<mosaic_0001>
module attributes {stable_mosaic.version = 11 : i64} {
  func.func @_focal_loss_kernel(%arg0: i32, %arg1: i32, %arg2: memref<16x128xf32, #tpu.memory_space<vmem>>, %arg3: memref<16x128xf32, #tpu.memory_space<vmem>>, %arg4: memref<1x1xf32, #tpu.memory_space<smem>>, %arg5: memref<8x128xf32, #tpu.memory_space<vmem>>) attributes {dimension_semantics = [#tpu.dimension_semantics<parallel>, #tpu.dimension_semantics<arbitrary>], iteration_bounds = array<i64: 1, 1>, scalar_prefetch = 0 : i64, scratch_operands = 1 : i64, tpu.core_type = #tpu.core_type<tc>, window_params = [{transform_indices = @transform_0, window_bounds = array<i64: 16, 128>}, {transform_indices = @transform_1, window_bounds = array<i64: 16, 128>}, {transform_indices = @transform_2, window_bounds = array<i64: 1, 1>}]} {
    %c0_i32 = arith.constant 0 : i32
    %0 = arith.cmpi eq, %arg1, %c0_i32 : i32
    %1 = arith.extui %0 : i1 to i32
    %c0_i32_0 = arith.constant 0 : i32
    %2 = arith.cmpi ne, %1, %c0_i32_0 : i32
    scf.if %2 {
      %cst = arith.constant 0.000000e+00 : f32
      %12 = vector.broadcast %cst : f32 to vector<8x128xf32>
      %c0 = arith.constant 0 : index
      %c0_5 = arith.constant 0 : index
      %13 = vector.load %arg5[%c0, %c0_5] : memref<8x128xf32, #tpu.memory_space<vmem>>, vector<8x128xf32>
      tpu.vector_store %arg5[%c0, %c0_5], %12 {strides = array<i32>} : memref<8x128xf32, #tpu.memory_space<vmem>>, vector<8x128xf32>,
    } else {
    }
    %c1_i32 = arith.constant 1 : i32
    %3 = arith.muli %arg0, %c1_i32 : i32
    %4 = arith.addi %3, %arg1 : i32
    %c16_i32 = arith.constant 16 : i32
    %5 = arith.muli %4, %c16_i32 : i32
    %c16_i32_1 = arith.constant 16 : i32
    %6 = arith.cmpi slt, %5, %c16_i32_1 : i32
    %7 = arith.extui %6 : i1 to i32
    %c0_i32_2 = arith.constant 0 : i32
    %8 = arith.cmpi ne, %7, %c0_i32_2 : i32
    scf.if %8 {
      %c0 = arith.constant 0 : index
      %c0_5 = arith.constant 0 : index
      %12 = vector.load %arg2[%c0, %c0_5] : memref<16x128xf32, #tpu.memory_space<vmem>>, vector<16x128xf32>
      %c0_6 = arith.constant 0 : index
      %c0_7 = arith.constant 0 : index
      %13 = vector.load %arg3[%c0_6, %c0_7] : memref<16x128xf32, #tpu.memory_space<vmem>>, vector<16x128xf32>
      %cst = arith.constant 0.000000e+00 : f32
      %14 = vector.broadcast %cst : f32 to vector<16x128xf32>
      %15 = arith.maximumf %12, %14 : vector<16x128xf32>
      %16 = arith.mulf %12, %13 : vector<16x128xf32>
      %17 = arith.subf %15, %16 : vector<16x128xf32>
      %18 = math.absf %12 : vector<16x128xf32>
      %cst_8 = arith.constant 0.000000e+00 : f32
      %19 = vector.broadcast %cst_8 : f32 to vector<16x128xf32>
      %20 = arith.subf %19, %18 : vector<16x128xf32>
      %21 = math.exp %20 : vector<16x128xf32>
      %22 = math.log1p %21 : vector<16x128xf32>
      %23 = arith.addf %17, %22 : vector<16x128xf32>
      %cst_9 = arith.constant 0.000000e+00 : f32
      %24 = vector.broadcast %cst_9 : f32 to vector<16x128xf32>
      %25 = arith.subf %24, %23 : vector<16x128xf32>
      %26 = math.exp %25 : vector<16x128xf32>
      %cst_10 = arith.constant 1.000000e+00 : f32
      %27 = vector.broadcast %cst_10 : f32 to vector<16x128xf32>
      %28 = arith.subf %27, %26 : vector<16x128xf32>
      %29 = arith.mulf %28, %28 : vector<16x128xf32>
      %30 = arith.mulf %29, %23 : vector<16x128xf32>
      %c16_i32_11 = arith.constant 16 : i32
      %31 = arith.addi %5, %c16_i32_11 : i32
      %c16_i32_12 = arith.constant 16 : i32
      %32 = arith.cmpi sle, %31, %c16_i32_12 : i32
      %33 = arith.extui %32 : i1 to i32
      %c0_i32_13 = arith.constant 0 : i32
      %34 = arith.cmpi ne, %33, %c0_i32_13 : i32
      scf.if %34 {
        %c0_17 = arith.constant 0 : index
        %c0_18 = arith.constant 0 : index
        %39 = vector.load %arg5[%c0_17, %c0_18] : memref<8x128xf32, #tpu.memory_space<vmem>>, vector<8x128xf32>
        %40 = vector.shape_cast %30 : vector<16x128xf32> to vector<2x8x128xf32>
        %cst_19 = arith.constant dense<0.000000e+00> : vector<8x128xf32>
        %41 = vector.multi_reduction <add>, %40, %cst_19 [0] : vector<2x8x128xf32> to vector<8x128xf32>
        %42 = arith.addf %39, %41 : vector<8x128xf32>
        %c0_20 = arith.constant 0 : index
        %c0_21 = arith.constant 0 : index
        %43 = vector.load %arg5[%c0_20, %c0_21] : memref<8x128xf32, #tpu.memory_space<vmem>>, vector<8x128xf32>
        tpu.vector_store %arg5[%c0_20, %c0_21], %42 {strides = array<i32>} : memref<8x128xf32, #tpu.memory_space<vmem>>, vector<8x128xf32>,
      } else {
      }
      %c16_i32_14 = arith.constant 16 : i32
      %35 = arith.addi %5, %c16_i32_14 : i32
      %c16_i32_15 = arith.constant 16 : i32
      %36 = arith.cmpi sgt, %35, %c16_i32_15 : i32
      %37 = arith.extui %36 : i1 to i32
      %c0_i32_16 = arith.constant 0 : i32
      %38 = arith.cmpi ne, %37, %c0_i32_16 : i32
      scf.if %38 {
        %39 = tpu.iota {dimensions = array<i32: 0>} : vector<16x128xi32>
        %40 = vector.broadcast %5 : i32 to vector<16x128xi32>
        %41 = arith.addi %40, %39 : vector<16x128xi32>
        %c16_i32_17 = arith.constant 16 : i32
        %42 = vector.broadcast %c16_i32_17 : i32 to vector<16x128xi32>
        %43 = arith.cmpi slt, %41, %42 : vector<16x128xi32>
        %cst_18 = arith.constant 0.000000e+00 : f32
        %44 = vector.broadcast %cst_18 : f32 to vector<16x128xf32>
        %45 = arith.select %43, %30, %44 : vector<16x128xi1>, vector<16x128xf32>
        %c0_19 = arith.constant 0 : index
        %c0_20 = arith.constant 0 : index
        %46 = vector.load %arg5[%c0_19, %c0_20] : memref<8x128xf32, #tpu.memory_space<vmem>>, vector<8x128xf32>
        %47 = vector.shape_cast %45 : vector<16x128xf32> to vector<2x8x128xf32>
        %cst_21 = arith.constant dense<0.000000e+00> : vector<8x128xf32>
        %48 = vector.multi_reduction <add>, %47, %cst_21 [0] : vector<2x8x128xf32> to vector<8x128xf32>
        %49 = arith.addf %46, %48 : vector<8x128xf32>
        %c0_22 = arith.constant 0 : index
        %c0_23 = arith.constant 0 : index
        %50 = vector.load %arg5[%c0_22, %c0_23] : memref<8x128xf32, #tpu.memory_space<vmem>>, vector<8x128xf32>
        tpu.vector_store %arg5[%c0_22, %c0_23], %49 {strides = array<i32>} : memref<8x128xf32, #tpu.memory_space<vmem>>, vector<8x128xf32>,
      } else {
      }
    } else {
    }
    %c0_i32_3 = arith.constant 0 : i32
    %9 = arith.cmpi eq, %arg1, %c0_i32_3 : i32
    %10 = arith.extui %9 : i1 to i32
    %c0_i32_4 = arith.constant 0 : i32
    %11 = arith.cmpi ne, %10, %c0_i32_4 : i32
    scf.if %11 {
      %c0 = arith.constant 0 : index
      %c0_5 = arith.constant 0 : index
      %12 = vector.load %arg5[%c0, %c0_5] : memref<8x128xf32, #tpu.memory_space<vmem>>, vector<8x128xf32>
      %13 = vector.shape_cast %12 : vector<8x128xf32> to vector<1x8x128xf32>
      %cst = arith.constant dense<0.000000e+00> : vector<1xf32>
      %14 = vector.multi_reduction <add>, %13, %cst [1, 2] : vector<1x8x128xf32> to vector<1xf32>
      %15 = vector.shape_cast %14 : vector<1xf32> to vector<1x1x1xf32>
      %16 = vector.extract %15[0, 0, 0] : f32 from vector<1x1x1xf32>
      %c0_6 = arith.constant 0 : index
      %c0_7 = arith.constant 0 : index
      %17 = memref.load %arg4[%c0_6, %c0_7] : memref<1x1xf32, #tpu.memory_space<smem>>
      memref.store %16, %arg4[%c0_6, %c0_7] : memref<1x1xf32, #tpu.memory_space<smem>>
    } else {
    }
    return
  }
  func.func @transform_0(%arg0: i32, %arg1: i32) -> (i32, i32) {
    %c1_i32 = arith.constant 1 : i32
    %0 = arith.muli %arg0, %c1_i32 : i32
    %1 = arith.addi %0, %arg1 : i32
    %c0_i32 = arith.constant 0 : i32
    %2 = arith.minsi %1, %c0_i32 : i32
    %c0_i32_0 = arith.constant 0 : i32
    %c0_i32_1 = arith.constant 0 : i32
    return %2, %c0_i32_0 : i32, i32
  }
  func.func @transform_1(%arg0: i32, %arg1: i32) -> (i32, i32) {
    %c1_i32 = arith.constant 1 : i32
    %0 = arith.muli %arg0, %c1_i32 : i32
    %1 = arith.addi %0, %arg1 : i32
    %c0_i32 = arith.constant 0 : i32
    %2 = arith.minsi %1, %c0_i32 : i32
    %c0_i32_0 = arith.constant 0 : i32
    %c0_i32_1 = arith.constant 0 : i32
    return %2, %c0_i32_0 : i32, i32
  }
  func.func @transform_2(%arg0: i32, %arg1: i32) -> (i32, i32) {
    %c0_i32 = arith.constant 0 : i32
    %c0_i32_0 = arith.constant 0 : i32
    return %arg0, %c0_i32 : i32, i32
  }
}

</mosaic_0001>

<llo_original>
// kernel: tpu_custom_call.1
$region0: #{tpu_custom_call.1}
  #allocation0 [shape = 'u32[]', space=smem, size = 0x4, offset = 0x4, fixed_abs, tag = 'smem constant byte address 0x4 - core index']
  #allocation1 [shape = 'u32[144,128]{1,0:T(1,128)}', space=vmem, size = 0x12000, scoped, tag = 'internal scratch']
  #allocation2 [shape = 'f32[8,128]{1,0:T(8,128)}', space=vmem, size = 0x1000, scoped, tag = 'scratch operand']
  %s0 = inlined_call_operand.hbm [shape: f32[16,128], index: 0, kind: input, shape index: {}]
  %s1 = inlined_call_operand.hbm [shape: f32[16,128], index: 1, kind: input, shape index: {}]
  %s2 = inlined_call_operand.hbm [shape: f32[1,1], index: 2, kind: output, shape index: {}]
  %s3 = sld [smem:[#allocation0]]
  $region46: #{tpu_custom_call.1} parent=0
    _
  %s5 = ssub.s32 1, %s3
  %s6 = scalar_select 0, %s5, %s3
  $region1: #{tpu_custom_call.1} parent=0
    #allocation3 [shape = 'u8[8192]{0}', space=vmem, size = 0x2000, scoped, tag = 'input window, operand 0, single buffered']
    #allocation4 [shape = 's32[1]{0}', space=sflag, size = 0x4, scoped, tag = 'scoped memory for tpu_custom_call.1']
    #allocation5 [shape = 's32[1]{0}', space=sflag, size = 0x4, scoped, tag = 'scoped memory for tpu_custom_call.1']
    #allocation6 [shape = 'u8[8192]{0}', space=vmem, size = 0x2000, scoped, tag = 'input window, operand 1, single buffered']
    #allocation7 [shape = 's32[1]{0}', space=sflag, size = 0x4, scoped, tag = 'scoped memory for tpu_custom_call.1']
    #allocation8 [shape = 'u8[512]{0}', space=smem, size = 0x200, scoped, tag = 'output window, operand 0, single buffered']
    %7 = vsyncpa [#allocation4], 0
    %8 = vsyncpa [#allocation7], 0
    %9 = vsyncpa [#allocation5], 0
    // Predicated region
    $region2: #{tpu_custom_call.1} parent=1 // pred_check
      _
    $region3: #{tpu_custom_call.1} parent=1 // pred_check_branch
      %11 = sbr.rel (0) target = $region5
    $region4: #{tpu_custom_call.1} parent=1 // pred_region
      %s12 = sadd.s32 0, 0
      %p13 = scmp.lt.s32.totalorder %s12, 0
      %s14 = scalar_select %p13, %s12, 0
      %s15 = smul.u32 2, %s14
      %s17 = ssub.s32 256, 256
      %18 = vsyncadd [#allocation4], %s17
      %s19 = smul.addr %s15, 128
      %s20 = scalar_lea.hbm %s0, %s19
      %s21 = sshll.u32 [#allocation3], 4
      %s22 = int_to_ptr.vmem [resolvable:$true] %s21
      %27 = dma.hbm_to_vmem [thread:$0]  %s20, 256, %s22, [#allocation4], 128, 128, 8
    $region5: #{tpu_custom_call.1} parent=1 // pred_fallthru
      _
    // Predicated region
    $region6: #{tpu_custom_call.1} parent=1 // pred_check
      _
    $region7: #{tpu_custom_call.1} parent=1 // pred_check_branch
      %29 = sbr.rel (0) target = $region9
    $region8: #{tpu_custom_call.1} parent=1 // pred_region
      %s30 = sadd.s32 0, 0
      %p31 = scmp.lt.s32.totalorder %s30, 0
      %s32 = scalar_select %p31, %s30, 0
      %s33 = smul.u32 2, %s32
      %s35 = ssub.s32 256, 256
      %36 = vsyncadd [#allocation7], %s35
      %s37 = smul.addr %s33, 128
      %s38 = scalar_lea.hbm %s1, %s37
      %s39 = sshll.u32 [#allocation6], 4
      %s40 = int_to_ptr.vmem [resolvable:$true] %s39
      %45 = dma.hbm_to_vmem [thread:$0]  %s38, 256, %s40, [#allocation7], 128, 128, 8
    $region9: #{tpu_custom_call.1} parent=1 // pred_fallthru
      _
    // Predicated region
    $region10: #{tpu_custom_call.1} parent=1 // pred_check
      _
    $region11: #{tpu_custom_call.1} parent=1 // pred_check_branch
      %47 = sbr.rel (0) target = $region13
    $region12: #{tpu_custom_call.1} parent=1 // pred_region
      %48 = dma.done [#allocation4], 256
    $region13: #{tpu_custom_call.1} parent=1 // pred_fallthru
      _
    // Predicated region
    $region14: #{tpu_custom_call.1} parent=1 // pred_check
      _
    $region15: #{tpu_custom_call.1} parent=1 // pred_check_branch
      %50 = sbr.rel (0) target = $region17
    $region16: #{tpu_custom_call.1} parent=1 // pred_region
      %51 = dma.done [#allocation7], 256
    $region17: #{tpu_custom_call.1} parent=1 // pred_fallthru
      _
    %s52 = sadd.s32 0, 0
    %p53 = scmp.lt.s32.totalorder %s52, 0
    %s54 = scalar_select %p53, %s52, 0
    %s55 = smul.u32 2, %s54
    %s56 = sadd.s32 0, 0
    %p57 = scmp.lt.s32.totalorder %s56, 0
    %s58 = scalar_select %p57, %s56, 0
    %s59 = smul.u32 2, %s58
    %p60 = scmp.eq.s32.totalorder 0, 0
    // Predicated region
    $region18: #{tpu_custom_call.1} parent=1 // pred_check
      %p61 = pneg %p60
    $region19: #{tpu_custom_call.1} parent=1 // pred_check_branch
      %63 = sbr.rel (%p61) target = $region21
    $region20: #{tpu_custom_call.1} parent=1 // pred_region
      %64 = vst [vmem:[#allocation2] sm:$0xff] 0.0
    $region21: #{tpu_custom_call.1} parent=1 // pred_fallthru
      _
    %s65 = sadd.s32 0, 0
    %s66 = smul.u32 %s65, 16
    %p67 = scmp.lt.s32.totalorder %s66, 16
    // Predicated region
    $region22: #{tpu_custom_call.1} parent=1 // pred_check
      %p68 = pneg %p67
    $region23: #{tpu_custom_call.1} parent=1 // pred_check_branch
      %70 = sbr.rel (%p68) target = $region25
    $region24: #{tpu_custom_call.1} parent=1 // pred_region
      %v71 = vld [vmem:[#allocation3] sm:$0xff]
      %v72 = vld [vmem:[#allocation3 + $0x8] sm:$0xff]
      %v73 = vld [vmem:[#allocation6] sm:$0xff]
      %v74 = vld [vmem:[#allocation6 + $0x8] sm:$0xff]
      %v75 = vmax.f32 %v71, 0.0
      %v76 = vmax.f32 %v72, 0.0
      %v77 = vmul.f32 %v71, %v73
      %v78 = vmul.f32 %v72, %v74
      %v79 = vsub.f32 %v75, %v77
      %v80 = vsub.f32 %v76, %v78
      %v81 = vand.u32 2147483647, %v71
      %v82 = vand.u32 2147483647, %v72
      %v83 = vsub.f32 0.0, %v81
      %v84 = vsub.f32 0.0, %v82
      %v85 = vmul.f32 %v83, 1.442695
      %v86 = vpow.pop %v85
      %v87 = vmul.f32 %v84, 1.442695
      %v88 = vpow.pop %v87
      %v89 = vadd.f32 %v86, 1.0
      %v90 = vlog2.pop %v89
      %v91 = vmul.f32 %v90, 0.6931472
      %v92 = vmul.f32 -0.5, %v86
      %v93 = vadd.f32 %v92, 1.0
      %v94 = vmul.f32 %v93, %v86
      %v95 = vand.u32 2147483647, %v86
      %vm96 = vcmp.lt.f32.partialorder %v95, 0.0004427343
      %v97 = vsel %vm96, %v94, %v91
      %v98 = vadd.f32 %v88, 1.0
      %v99 = vlog2.pop %v98
      %v100 = vmul.f32 %v99, 0.6931472
      %v101 = vmul.f32 -0.5, %v88
      %v102 = vadd.f32 %v101, 1.0
      %v103 = vmul.f32 %v102, %v88
      %v104 = vand.u32 2147483647, %v88
      %vm105 = vcmp.lt.f32.partialorder %v104, 0.0004427343
      %v106 = vsel %vm105, %v103, %v100
      %v107 = vadd.f32 %v79, %v97
      %v108 = vadd.f32 %v80, %v106
      %v109 = vsub.f32 0.0, %v107
      %v110 = vsub.f32 0.0, %v108
      %v111 = vmul.f32 %v109, 1.442695
      %v112 = vpow.pop %v111
      %v113 = vmul.f32 %v110, 1.442695
      %v114 = vpow.pop %v113
      %v115 = vsub.f32 1.0, %v112
      %v116 = vsub.f32 1.0, %v114
      %v117 = vmul.f32 %v115, %v115
      %v118 = vmul.f32 %v116, %v116
      %v119 = vmul.f32 %v117, %v107
      %v120 = vmul.f32 %v118, %v108
      %s121 = sadd.s32 %s66, 16
      %p122 = scmp.le.s32.totalorder %s121, 16
      // Predicated region
      $region26: #{tpu_custom_call.1} parent=24 // pred_check
        %p123 = pneg %p122
      $region27: #{tpu_custom_call.1} parent=24 // pred_check_branch
        %125 = sbr.rel (%p123) target = $region29
      $region28: #{tpu_custom_call.1} parent=24 // pred_region
        %v126 = vld [vmem:[#allocation2] sm:$0xff]
        %v127 = vadd.f32 %v119, %v120
        %v128 = vadd.f32 %v126, %v127
        %129 = vst [vmem:[#allocation2] sm:$0xff] %v128
      $region29: #{tpu_custom_call.1} parent=24 // pred_fallthru
        _
      %p130 = scmp.gt.s32.totalorder %s121, 16
      // Predicated region
      $region30: #{tpu_custom_call.1} parent=24 // pred_check
        %p131 = pneg %p130
      $region31: #{tpu_custom_call.1} parent=24 // pred_check_branch
        %133 = sbr.rel (%p131) target = $region33
      $region32: #{tpu_custom_call.1} parent=24 // pred_region
        %v134 = vlaneseq
        %v135 = vshrl.u32 %v134, 7
        %v136 = vadd.s32 %v135, 8
        %v137 = vstv %s66
        %v138 = vadd.s32 %v137, %v135
        %v139 = vadd.s32 %v137, %v136
        %vm140 = vcmp.lt.s32.totalorder %v138, 16
        %vm141 = vcmp.lt.s32.totalorder %v139, 16
        %v142 = vsel %vm140, %v119, 0.0
        %v143 = vsel %vm141, %v120, 0.0
        %v144 = vld [vmem:[#allocation2] sm:$0xff]
        %v145 = vadd.f32 %v142, %v143
        %v146 = vadd.f32 %v144, %v145
        %147 = vst [vmem:[#allocation2] sm:$0xff] %v146
      $region33: #{tpu_custom_call.1} parent=24 // pred_fallthru
        _
    $region25: #{tpu_custom_call.1} parent=1 // pred_fallthru
      _
    // Predicated region
    $region34: #{tpu_custom_call.1} parent=1 // pred_check
      %p148 = pneg %p60
    $region35: #{tpu_custom_call.1} parent=1 // pred_check_branch
      %150 = sbr.rel (%p148) target = $region37
    $region36: #{tpu_custom_call.1} parent=1 // pred_region
      %v151 = vld [vmem:[#allocation2] sm:$0xff]
      %152 = vadd.xlane.f32.xlu0 %v151
      %v153 = vpop.xlane.xlu0 %152
      %v154 = vrot.slane %v153, 4
      %v155 = vadd.f32 %v153, %v154
      %v156 = vrot.slane %v155, 2
      %v157 = vadd.f32 %v155, %v156
      %v158 = vrot.slane %v157, 1
      %v159 = vadd.f32 %v157, %v158
      %s160 = vtos %v159
      %s161 = scalar_lea.smem [#allocation8], 0
      %162 = sst [smem:[%s161]] %s160
    $region37: #{tpu_custom_call.1} parent=1 // pred_fallthru
      _
    // Predicated region
    $region38: #{tpu_custom_call.1} parent=1 // pred_check
      _
    $region39: #{tpu_custom_call.1} parent=1 // pred_check_branch
      %164 = sbr.rel (0) target = $region41
    $region40: #{tpu_custom_call.1} parent=1 // pred_region
      %s166 = ssub.s32 16, 16
      %167 = vsyncadd [#allocation5], %s166
      %170 = dma.smem_to_hbm [#allocation8], 16, %s2, [#allocation5]
    $region41: #{tpu_custom_call.1} parent=1 // pred_fallthru
      _
    // Predicated region
    $region42: #{tpu_custom_call.1} parent=1 // pred_check
      _
    $region43: #{tpu_custom_call.1} parent=1 // pred_check_branch
      %172 = sbr.rel (0) target = $region45
    $region44: #{tpu_custom_call.1} parent=1 // pred_region
      %173 = dma.done [#allocation5], 16
    $region45: #{tpu_custom_call.1} parent=1 // pred_fallthru
      _
    %174 = sfence
    %175 = vsyncpa [#allocation4], 1
    %176 = vsyncpa [#allocation7], 1
    %177 = vsyncpa [#allocation5], 1

</llo_original>
